<compile_context>
chip_gen: v7x
topology: tpu7x:2x2x1
jax: 0.10.0
libtpu: 0.0.40
codegen_flags: <defaults>
</compile_context>

<pallas_src>
import math

import jax
import jax.numpy as jnp
from jax.experimental import pallas as pl
from jax.experimental.pallas import tpu as pltpu


# ---------------------------------------------------------------------------
# Kernel: out = mu + softplus(rho) * eps   (pure VPU/EUP elementwise work)
# ---------------------------------------------------------------------------
def _mfvd_kernel(mu_ref, rho_ref, eps_ref, out_ref):
    # mu_ref / rho_ref: (1, bd)   eps_ref / out_ref: (bn, bd)
    sigma = jnp.log1p(jnp.exp(rho_ref[...]))          # softplus(rho), EUP exp
    out_ref[...] = mu_ref[...] + sigma * eps_ref[...]  # broadcast over rows


def _pick_block(total, cap):
    # largest divisor of `total` that is <= cap (total is a multiple of 8/128,
    # so the gcd stays sublane/lane aligned)
    return math.gcd(total, cap)


def mfvd_sample(mu, rho, eps):
    """out = mu + softplus(rho) * eps via a tiled Pallas TPU kernel."""
    n, d = eps.shape
    n_p = n + (-n % 8)      # sublane-full rows
    d_p = d + (-d % 128)    # lane-dense columns

    mu2 = jnp.pad(mu.astype(jnp.float32)[None, :], ((0, 0), (0, d_p - d)))
    rho2 = jnp.pad(rho.astype(jnp.float32)[None, :], ((0, 0), (0, d_p - d)))
    eps2 = jnp.pad(eps.astype(jnp.float32), ((0, n_p - n), (0, d_p - d)))

    bn = _pick_block(n_p, 256)    # rows per tile (multiple of 8)
    bd = _pick_block(d_p, 512)    # lanes per tile (multiple of 128)
    grid = (n_p // bn, d_p // bd)

    out = pl.pallas_call(
        _mfvd_kernel,
        out_shape=jax.ShapeDtypeStruct((n_p, d_p), jnp.float32),
        grid_spec=pltpu.PrefetchScalarGridSpec(
            num_scalar_prefetch=0,
            grid=grid,
            in_specs=[
                pl.BlockSpec((1, bd), lambda i, j: (0, j)),    # mu
                pl.BlockSpec((1, bd), lambda i, j: (0, j)),    # rho
                pl.BlockSpec((bn, bd), lambda i, j: (i, j)),   # eps
            ],
            out_specs=pl.BlockSpec((bn, bd), lambda i, j: (i, j)),
        ),
        compiler_params=pltpu.CompilerParams(
            dimension_semantics=("parallel", "parallel")),
    )(mu2, rho2, eps2)
    return out[:n, :d]


# ---------------------------------------------------------------------------
# Module wrapper (mirrors MeanFieldVariationalDistribution)
# ---------------------------------------------------------------------------
class MeanFieldVariationalDistribution:
    def __init__(self, nb_dim, std_init=1.0, sigma=1.0, *, key):
        self.nb_dim = nb_dim
        # rho = softplus^-1(sigma) = log(exp(sigma) - 1), same init as PyTorch
        self.rho = jnp.log(jnp.exp(sigma * jnp.ones((nb_dim,), jnp.float32)) - 1.0)
        self.mu = std_init * jax.random.normal(key, (nb_dim,), dtype=jnp.float32)

    @property
    def sigma(self):
        return jnp.log1p(jnp.exp(self.rho))

    def forward(self, n=1, *, key):
        # torch.randn equivalent; RNG stays outside the kernel so outputs are
        # reproducible and exactly checkable against a pure-JAX reference.
        eps = jax.random.normal(key, (n, self.nb_dim), dtype=jnp.float32)
        return mfvd_sample(self.mu, self.rho, eps)


if __name__ == "__main__":
    key = jax.random.PRNGKey(0)
    k_mu, k_e1, k_e2, k_e3 = jax.random.split(key, 4)

    # small shapes implied by the module: nb_dim=32 latent dims, n=1..4 samples
    nb_dim = 32
    dist = MeanFieldVariationalDistribution(nb_dim, std_init=1.0, sigma=1.0, key=k_mu)

    # n = 1 (direct kernel call, exact check against plain-JAX reference)
    eps1 = jax.random.normal(k_e1, (1, nb_dim), dtype=jnp.float32)
    out1 = jax.block_until_ready(mfvd_sample(dist.mu, dist.rho, eps1))
    ref1 = dist.mu[None, :] + dist.sigma[None, :] * eps1
    assert out1.shape == (1, nb_dim)
    assert jnp.allclose(out1, ref1, atol=1e-6), "n=1 mismatch"

    # n = 4 through forward()
    out4 = jax.block_until_ready(dist.forward(n=4, key=k_e2))
    eps4 = jax.random.normal(k_e2, (4, nb_dim), dtype=jnp.float32)
    ref4 = dist.mu[None, :] + dist.sigma[None, :] * eps4
    assert out4.shape == (4, nb_dim)
    assert jnp.allclose(out4, ref4, atol=1e-6), "n=4 mismatch"
    assert jnp.all(jnp.isfinite(out4))

    # larger case to exercise the tiled 2-D grid (16 rows x 1024 lanes -> 2 tiles)
    nb_big = 1024
    dist_b = MeanFieldVariationalDistribution(nb_big, std_init=0.5, sigma=2.0, key=k_mu)
    eps_b = jax.random.normal(k_e3, (16, nb_big), dtype=jnp.float32)
    out_b = jax.block_until_ready(mfvd_sample(dist_b.mu, dist_b.rho, eps_b))
    ref_b = dist_b.mu[None, :] + dist_b.sigma[None, :] * eps_b
    assert out_b.shape == (16, nb_big)
    assert jnp.allclose(out_b, ref_b, atol=1e-5), "tiled case mismatch"

    print("KERNEL_OK")
</pallas_src>

<mosaic_0001>
module attributes {stable_mosaic.version = 11 : i64} {
  func.func @_mfvd_kernel(%arg0: i32, %arg1: i32, %arg2: memref<1x128xf32, #tpu.memory_space<vmem>>, %arg3: memref<1x128xf32, #tpu.memory_space<vmem>>, %arg4: memref<8x128xf32, #tpu.memory_space<vmem>>, %arg5: memref<8x128xf32, #tpu.memory_space<vmem>>) attributes {dimension_semantics = [#tpu.dimension_semantics<parallel>, #tpu.dimension_semantics<parallel>], iteration_bounds = array<i64: 1, 1>, scalar_prefetch = 0 : i64, scratch_operands = 0 : i64, tpu.core_type = #tpu.core_type<tc>, window_params = [{transform_indices = @transform_0, window_bounds = array<i64: 1, 128>}, {transform_indices = @transform_1, window_bounds = array<i64: 1, 128>}, {transform_indices = @transform_2, window_bounds = array<i64: 8, 128>}, {transform_indices = @transform_3, window_bounds = array<i64: 8, 128>}]} {
    %c0 = arith.constant 0 : index
    %c0_0 = arith.constant 0 : index
    %0 = vector.load %arg3[%c0, %c0_0] : memref<1x128xf32, #tpu.memory_space<vmem>>, vector<1x128xf32>
    %1 = math.exp %0 : vector<1x128xf32>
    %2 = math.log1p %1 : vector<1x128xf32>
    %c0_1 = arith.constant 0 : index
    %c0_2 = arith.constant 0 : index
    %3 = vector.load %arg2[%c0_1, %c0_2] : memref<1x128xf32, #tpu.memory_space<vmem>>, vector<1x128xf32>
    %c0_3 = arith.constant 0 : index
    %c0_4 = arith.constant 0 : index
    %4 = vector.load %arg4[%c0_3, %c0_4] : memref<8x128xf32, #tpu.memory_space<vmem>>, vector<8x128xf32>
    %5 = vector.broadcast %2 : vector<1x128xf32> to vector<8x128xf32>
    %6 = arith.mulf %5, %4 : vector<8x128xf32>
    %7 = vector.broadcast %3 : vector<1x128xf32> to vector<8x128xf32>
    %8 = arith.addf %7, %6 : vector<8x128xf32>
    %c0_5 = arith.constant 0 : index
    %c0_6 = arith.constant 0 : index
    %9 = vector.load %arg5[%c0_5, %c0_6] : memref<8x128xf32, #tpu.memory_space<vmem>>, vector<8x128xf32>
    tpu.vector_store %arg5[%c0_5, %c0_6], %8 {strides = array<i32>} : memref<8x128xf32, #tpu.memory_space<vmem>>, vector<8x128xf32>,
    return
  }
  func.func @transform_0(%arg0: i32, %arg1: i32) -> (i32, i32) {
    %c0_i32 = arith.constant 0 : i32
    %c0_i32_0 = arith.constant 0 : i32
    return %c0_i32, %arg1 : i32, i32
  }
  func.func @transform_1(%arg0: i32, %arg1: i32) -> (i32, i32) {
    %c0_i32 = arith.constant 0 : i32
    %c0_i32_0 = arith.constant 0 : i32
    return %c0_i32, %arg1 : i32, i32
  }
  func.func @transform_2(%arg0: i32, %arg1: i32) -> (i32, i32) {
    %c0_i32 = arith.constant 0 : i32
    return %arg0, %arg1 : i32, i32
  }
  func.func @transform_3(%arg0: i32, %arg1: i32) -> (i32, i32) {
    %c0_i32 = arith.constant 0 : i32
    return %arg0, %arg1 : i32, i32
  }
}

</mosaic_0001>

<llo_original>
// kernel: tpu_custom_call.1
$region0: #{tpu_custom_call.1}
  #allocation0 [shape = 'u32[]', space=smem, size = 0x4, offset = 0x4, fixed_abs, tag = 'smem constant byte address 0x4 - core index']
  #allocation1 [shape = 'u32[144,128]{1,0:T(1,128)}', space=vmem, size = 0x12000, scoped, tag = 'internal scratch']
  %s0 = inlined_call_operand.hbm [shape: f32[1,128], index: 0, kind: input, shape index: {}]
  %s1 = inlined_call_operand.vmem [shape: f32[1,128], index: 1, kind: input, shape index: {}]
  %s2 = inlined_call_operand.hbm [shape: f32[8,128], index: 2, kind: input, shape index: {}]
  %s3 = inlined_call_operand.hbm [shape: f32[8,128], index: 3, kind: output, shape index: {}]
  %s4 = sld [smem:[#allocation0]]
  $region30: #{tpu_custom_call.1} parent=0
    _
  %s6 = ssub.s32 1, %s4
  %s7 = scalar_select 0, %s6, %s4
  $region1: #{tpu_custom_call.1} parent=0
    #allocation2 [shape = 'u8[512]{0}', space=vmem, size = 0x400, scoped, tag = 'input window, operand 0, single buffered']
    #allocation3 [shape = 's32[1]{0}', space=sflag, size = 0x4, scoped, tag = 'scoped memory for tpu_custom_call.1']
    #allocation4 [shape = 's32[1]{0}', space=sflag, size = 0x4, scoped, tag = 'scoped memory for tpu_custom_call.1']
    #allocation5 [shape = 'u8[4096]{0}', space=vmem, size = 0x1000, scoped, tag = 'input window, operand 2, single buffered']
    #allocation6 [shape = 's32[1]{0}', space=sflag, size = 0x4, scoped, tag = 'scoped memory for tpu_custom_call.1']
    #allocation7 [shape = 'u8[4096]{0}', space=vmem, size = 0x1000, scoped, tag = 'output window, operand 0, single buffered']
    %8 = vsyncpa [#allocation3], 0
    %9 = vsyncpa [#allocation6], 0
    %10 = vsyncpa [#allocation4], 0
    // Predicated region
    $region2: #{tpu_custom_call.1} parent=1 // pred_check
      _
    $region3: #{tpu_custom_call.1} parent=1 // pred_check_branch
      %12 = sbr.rel (0) target = $region5
    $region4: #{tpu_custom_call.1} parent=1 // pred_region
      %s14 = ssub.s32 16, 16
      %15 = vsyncadd [#allocation3], %s14
      %s17 = sshll.u32 [#allocation2], 4
      %s18 = int_to_ptr.vmem [resolvable:$true] %s17
      %20 = dma.hbm_to_vmem [thread:$0]  %s0, 16, %s18, [#allocation3]
    $region5: #{tpu_custom_call.1} parent=1 // pred_fallthru
      _
    // Predicated region
    $region6: #{tpu_custom_call.1} parent=1 // pred_check
      _
    $region7: #{tpu_custom_call.1} parent=1 // pred_check_branch
      %22 = sbr.rel (0) target = $region9
    $region8: #{tpu_custom_call.1} parent=1 // pred_region
      _
    $region9: #{tpu_custom_call.1} parent=1 // pred_fallthru
      _
    // Predicated region
    $region10: #{tpu_custom_call.1} parent=1 // pred_check
      _
    $region11: #{tpu_custom_call.1} parent=1 // pred_check_branch
      %24 = sbr.rel (0) target = $region13
    $region12: #{tpu_custom_call.1} parent=1 // pred_region
      %s26 = ssub.s32 128, 128
      %27 = vsyncadd [#allocation6], %s26
      %s29 = sshll.u32 [#allocation5], 4
      %s30 = int_to_ptr.vmem [resolvable:$true] %s29
      %32 = dma.hbm_to_vmem [thread:$0]  %s2, 128, %s30, [#allocation6]
    $region13: #{tpu_custom_call.1} parent=1 // pred_fallthru
      _
    // Predicated region
    $region14: #{tpu_custom_call.1} parent=1 // pred_check
      _
    $region15: #{tpu_custom_call.1} parent=1 // pred_check_branch
      %34 = sbr.rel (0) target = $region17
    $region16: #{tpu_custom_call.1} parent=1 // pred_region
      %35 = dma.done [#allocation3], 16
    $region17: #{tpu_custom_call.1} parent=1 // pred_fallthru
      _
    // Predicated region
    $region18: #{tpu_custom_call.1} parent=1 // pred_check
      _
    $region19: #{tpu_custom_call.1} parent=1 // pred_check_branch
      %37 = sbr.rel (0) target = $region21
    $region20: #{tpu_custom_call.1} parent=1 // pred_region
      %38 = dma.done [#allocation6], 128
    $region21: #{tpu_custom_call.1} parent=1 // pred_fallthru
      _
    %v39 = vld [vmem:[%s1] sm:$0x1]
    %v40 = vmul.f32 %v39, 1.442695
    %v41 = vpow.pop %v40
    %v42 = vadd.f32 %v41, 1.0
    %v43 = vlog2.pop %v42
    %v44 = vmul.f32 %v43, 0.6931472
    %v45 = vmul.f32 -0.5, %v41
    %v46 = vadd.f32 %v45, 1.0
    %v47 = vmul.f32 %v46, %v41
    %v48 = vand.u32 2147483647, %v41
    %vm49 = vcmp.lt.f32.partialorder %v48, 0.0004427343
    %v50 = vsel %vm49, %v47, %v44
    %v51 = vld [vmem:[#allocation2] sm:$0x1]
    %v52 = vld [vmem:[#allocation5] sm:$0xff]
    %v54 = vlaneseq
    %v55 = vshrl.u32 %v54, 7
    %v56 = vsub.s32 0, %v55
    %v57 = vrot.slane %v50, %v56
    %v59 = vmul.f32 %v57, %v52
    %v61 = vlaneseq
    %v62 = vshrl.u32 %v61, 7
    %v63 = vsub.s32 0, %v62
    %v64 = vrot.slane %v51, %v63
    %v66 = vadd.f32 %v64, %v59
    %67 = vst [vmem:[#allocation7] sm:$0xff] %v66
    // Predicated region
    $region22: #{tpu_custom_call.1} parent=1 // pred_check
      _
    $region23: #{tpu_custom_call.1} parent=1 // pred_check_branch
      %69 = sbr.rel (0) target = $region25
    $region24: #{tpu_custom_call.1} parent=1 // pred_region
      %s71 = ssub.s32 128, 128
      %72 = vsyncadd [#allocation4], %s71
      %s74 = sshll.u32 [#allocation7], 4
      %s75 = int_to_ptr.vmem [resolvable:$true] %s74
      %77 = dma.vmem_to_hbm [thread:$0]  %s75, 128, %s3, [#allocation4]
    $region25: #{tpu_custom_call.1} parent=1 // pred_fallthru
      _
    // Predicated region
    $region26: #{tpu_custom_call.1} parent=1 // pred_check
      _
    $region27: #{tpu_custom_call.1} parent=1 // pred_check_branch
      %79 = sbr.rel (0) target = $region29
    $region28: #{tpu_custom_call.1} parent=1 // pred_region
      %80 = dma.done [#allocation4], 128
    $region29: #{tpu_custom_call.1} parent=1 // pred_fallthru
      _
    %81 = vsyncpa [#allocation3], 1
    %82 = vsyncpa [#allocation6], 1
    %83 = vsyncpa [#allocation4], 1

</llo_original>
